<compile_context>
chip_gen: v5e
topology: v5e:2x2
jax: 0.10.0
libtpu: 0.0.40
codegen_flags: <defaults>
</compile_context>

<pallas_src>
import functools

import numpy as np
import jax
import jax.numpy as jnp
from jax.experimental import pallas as pl
from jax.experimental.pallas import tpu as pltpu

WAVELET_LEVEL = 3
NUM_NODES = 2 ** WAVELET_LEVEL        # 8
COEFF_LEN = 7                         # per-node coefficient length (56 / 8)
SIG_LEN = NUM_NODES * COEFF_LEN       # 56
MAX_TILE_C = 8192                     # channel rows per grid step
_PALLAS_MIN_CHANNELS = 512            # below this, plain XLA is cheaper
_INV_SQRT2 = 1.0 / np.sqrt(2.0)


# ----------------------------- numpy reference ------------------------------
def _haar_idwt(cA, cD):
    """pywt db1 inverse DWT (rec_lo=[1/sqrt2,1/sqrt2], rec_hi=[1/sqrt2,-1/sqrt2])."""
    n = cA.shape[-1]
    out = np.empty(cA.shape[:-1] + (2 * n,), dtype=np.float64)
    out[..., 0::2] = (cA + cD) * _INV_SQRT2
    out[..., 1::2] = (cA - cD) * _INV_SQRT2
    return out


def _iwpt_ref(coeffs_freq):
    """Inverse wavelet packet transform for one channel.

    coeffs_freq: (8, 7) numpy array, nodes in pywt get_level(order='freq') order.
    returns: (56,) reconstructed signal (float64).
    """
    coeffs_freq = np.asarray(coeffs_freq, dtype=np.float64)
    # freq index -> natural index is the Gray code i ^ (i >> 1)
    nat = [None] * NUM_NODES
    for fi in range(NUM_NODES):
        nat[fi ^ (fi >> 1)] = coeffs_freq[fi]
    nodes = nat
    for _ in range(WAVELET_LEVEL):
        nodes = [_haar_idwt(nodes[2 * p], nodes[2 * p + 1])
                 for p in range(len(nodes) // 2)]
    return nodes[0]


def build_synthesis_matrix():
    """M (56,56) with  out = M @ flat_freq_coeffs  (flat = concat of freq nodes)."""
    M = np.zeros((SIG_LEN, SIG_LEN), dtype=np.float32)
    for j in range(SIG_LEN):
        e = np.zeros(SIG_LEN, dtype=np.float64)
        e[j] = 1.0
        M[:, j] = _iwpt_ref(e.reshape(NUM_NODES, COEFF_LEN))
    return M


@functools.lru_cache(maxsize=1)
def _get_mt_np():
    """M^T as a host numpy array (56, 56), built exactly once.

    Kept on host so device placement is decided by JAX at call/jit time
    (avoids pinning to the first call's default device under multi-device).
    """
    return np.ascontiguousarray(build_synthesis_matrix().T)


# ------------------------------- Pallas kernel -------------------------------
def _iwpt_kernel(coeffs_ref, mt_ref, out_ref):
    # coeffs_ref: (tc, 56), mt_ref: (56, 56) == M^T (VMEM-resident),
    # out_ref: (tc, 56).   out = coeffs @ M^T
    out_ref[...] = jnp.dot(
        coeffs_ref[...], mt_ref[...], preferred_element_type=jnp.float32
    )


def _channel_dim_semantics():
    """CORE_PARALLEL shards the channel grid axis across both TensorCores on
    v7x; on single-TC chips (v5e/v6e) plain 'parallel' is the right choice."""
    try:
        kind = jax.devices()[0].device_kind.lower()
    except Exception:  # pragma: no cover - device query is best-effort
        kind = ""
    if "v7" in kind:
        return (pltpu.CORE_PARALLEL,)
    return ("parallel",)


def inverse_wavelet_packet_transform(coeffs, *, min_pallas_channels=_PALLAS_MIN_CHANNELS):
    """coeffs: (C, 8, 7) array, nodes in pywt frequency order.

    Returns (C, 56) float32 reconstructed signals (== torch.stack(..., dim=0)).
    """
    C = coeffs.shape[0]
    assert coeffs.shape[1:] == (NUM_NODES, COEFF_LEN), coeffs.shape
    flat = jnp.reshape(coeffs, (C, SIG_LEN)).astype(jnp.float32)
    mt = jnp.asarray(_get_mt_np())                     # (56, 56) float32

    if C < min_pallas_channels:
        # Tiny-C fallback: a 56x56 matmul fuses into the surrounding XLA graph
        # for free; pallas_call launch overhead would dominate here.
        return flat @ mt

    # Tile the channel axis: tc rows per grid step (sublane-aligned).  The
    # (56)-wide last dim equals the full array dim, so the (8,128) rule is
    # satisfied without lane padding.  No jnp.pad of the input: Pallas handles
    # the ragged final block (OOB input rows only affect OOB output rows,
    # which are dropped on writeback).
    tc = min(MAX_TILE_C, -(-C // 8) * 8)
    num_tiles = pl.cdiv(C, tc)

    return pl.pallas_call(
        _iwpt_kernel,
        out_shape=jax.ShapeDtypeStruct((C, SIG_LEN), jnp.float32),
        grid=(num_tiles,),
        in_specs=[
            pl.BlockSpec((tc, SIG_LEN), lambda i: (i, 0)),
            pl.BlockSpec((SIG_LEN, SIG_LEN), lambda i: (0, 0)),  # VMEM-resident
        ],
        out_specs=pl.BlockSpec((tc, SIG_LEN), lambda i: (i, 0)),
        compiler_params=pltpu.CompilerParams(
            dimension_semantics=_channel_dim_semantics(),
        ),
        cost_estimate=pl.CostEstimate(
            flops=2 * C * SIG_LEN * SIG_LEN,
            transcendentals=0,
            bytes_accessed=4 * (2 * C * SIG_LEN + SIG_LEN * SIG_LEN),
        ),
    )(flat, mt)


# ------------------------------------ main ------------------------------------
if __name__ == "__main__":
    key = jax.random.PRNGKey(0)
    k_small, k_pallas = jax.random.split(key)

    # (a) Small-C path, matching the torch test scale (uses the XLA fallback).
    c_small = 4
    x_small = jax.random.normal(
        k_small, (c_small, NUM_NODES, COEFF_LEN), dtype=jnp.float32)
    out_small = jax.block_until_ready(inverse_wavelet_packet_transform(x_small))

    # (b) Pallas kernel path (forced, still small shapes).
    c_pallas = 16
    x_pallas = jax.random.normal(
        k_pallas, (c_pallas, NUM_NODES, COEFF_LEN), dtype=jnp.float32)
    out_pallas = jax.block_until_ready(
        inverse_wavelet_packet_transform(x_pallas, min_pallas_channels=1))

    # Verify both against the pure-numpy port of the pywt reconstruction.
    # TODO(synk): this checks the linearized transform against the same Haar
    # recursion used to build M; a one-time cross-check vs. pywt.WaveletPacket
    # requires pywt, which is not available in-sandbox.
    for x, out in ((x_small, out_small), (x_pallas, out_pallas)):
        x_np = np.asarray(x)
        ref = np.stack([_iwpt_ref(x_np[c]) for c in range(x_np.shape[0])], axis=0)
        assert out.shape == (x_np.shape[0], SIG_LEN), out.shape
        np.testing.assert_allclose(np.asarray(out), ref.astype(np.float32),
                                   rtol=1e-5, atol=1e-5)

    print("KERNEL_OK")
</pallas_src>

<mosaic_0001>
module attributes {stable_mosaic.version = 11 : i64} {
  func.func @_iwpt_kernel(%arg0: i32, %arg1: memref<16x56xf32, #tpu.memory_space<vmem>>, %arg2: memref<56x56xf32, #tpu.memory_space<vmem>>, %arg3: memref<16x56xf32, #tpu.memory_space<vmem>>) attributes {dimension_semantics = [#tpu.dimension_semantics<parallel>], iteration_bounds = array<i64: 1>, scalar_prefetch = 0 : i64, scratch_operands = 0 : i64, tpu.core_type = #tpu.core_type<tc>, window_params = [{transform_indices = @transform_0, window_bounds = array<i64: 16, 56>}, {pipeline_mode = #tpu.pipeline_mode<synchronous>, transform_indices = @transform_1, window_bounds = array<i64: 56, 56>}, {transform_indices = @transform_2, window_bounds = array<i64: 16, 56>}]} {
    %c0 = arith.constant 0 : index
    %c0_0 = arith.constant 0 : index
    %0 = vector.load %arg1[%c0, %c0_0] : memref<16x56xf32, #tpu.memory_space<vmem>>, vector<16x56xf32>
    %c0_1 = arith.constant 0 : index
    %c0_2 = arith.constant 0 : index
    %1 = vector.load %arg2[%c0_1, %c0_2] : memref<56x56xf32, #tpu.memory_space<vmem>>, vector<56x56xf32>
    %cst = arith.constant dense<0.000000e+00> : vector<16x56xf32>
    %2 = tpu.matmul %0, %1, %cst {dimension_numbers = #tpu.dot_dimension_numbers<[1], [0], [0], [1], [0, 0, 1, 1], [], []>} : vector<16x56xf32>, vector<56x56xf32>, vector<16x56xf32> -> vector<16x56xf32>
    %c0_3 = arith.constant 0 : index
    %c0_4 = arith.constant 0 : index
    %3 = vector.load %arg3[%c0_3, %c0_4] : memref<16x56xf32, #tpu.memory_space<vmem>>, vector<16x56xf32>
    tpu.vector_store %arg3[%c0_3, %c0_4], %2 {strides = array<i32>} : memref<16x56xf32, #tpu.memory_space<vmem>>, vector<16x56xf32>,
    return
  }
  func.func @transform_0(%arg0: i32) -> (i32, i32) {
    %c0_i32 = arith.constant 0 : i32
    %c0_i32_0 = arith.constant 0 : i32
    return %arg0, %c0_i32 : i32, i32
  }
  func.func @transform_1(%arg0: i32) -> (i32, i32) {
    %c0_i32 = arith.constant 0 : i32
    %c0_i32_0 = arith.constant 0 : i32
    %c0_i32_1 = arith.constant 0 : i32
    return %c0_i32, %c0_i32_0 : i32, i32
  }
  func.func @transform_2(%arg0: i32) -> (i32, i32) {
    %c0_i32 = arith.constant 0 : i32
    %c0_i32_0 = arith.constant 0 : i32
    return %arg0, %c0_i32 : i32, i32
  }
}

</mosaic_0001>

<llo_original>
// kernel: tpu_custom_call.1
$region0: #{tpu_custom_call.1}
  #allocation0 [shape = 'u32[]', space=smem, size = 0x4, offset = 0x4, fixed_abs, tag = 'smem constant byte address 0x4 - core index']
  #allocation1 [shape = 'u32[72,128]{1,0:T(1,128)}', space=vmem, size = 0x9000, scoped, tag = 'internal scratch']
  %s0 = inlined_call_operand.hbm [shape: f32[16,56], index: 0, kind: input, shape index: {}]
  %s1 = inlined_call_operand.hbm [shape: f32[56,56], index: 1, kind: input, shape index: {}]
  %s2 = inlined_call_operand.hbm [shape: f32[16,56], index: 2, kind: output, shape index: {}]
  %s3 = sld [smem:[#allocation0]]
  $region26: #{tpu_custom_call.1} parent=0
    _
  %s5 = ssub.s32 1, %s3
  %s6 = scalar_select 0, %s5, %s3
  $region1: #{tpu_custom_call.1} parent=0
    #allocation2 [shape = 'u8[8192]{0}', space=vmem, size = 0x2000, scoped, tag = 'input window, operand 0, single buffered']
    #allocation3 [shape = 's32[1]{0}', space=sflag, size = 0x4, scoped, tag = 'scoped memory for tpu_custom_call.1']
    #allocation4 [shape = 's32[1]{0}', space=sflag, size = 0x4, scoped, tag = 'scoped memory for tpu_custom_call.1']
    #allocation5 [shape = 'u8[28672]{0}', space=vmem, size = 0x7000, scoped, tag = 'input window, operand 1, single buffered']
    #allocation6 [shape = 's32[1]{0}', space=sflag, size = 0x4, scoped, tag = 'scoped memory for tpu_custom_call.1']
    #allocation7 [shape = 'u8[8192]{0}', space=vmem, size = 0x2000, scoped, tag = 'output window, operand 0, single buffered']
    %7 = vsyncpa [#allocation3], 0
    %8 = vsyncpa [#allocation6], 0
    %9 = vsyncpa [#allocation4], 0
    // Predicated region
    $region2: #{tpu_custom_call.1} parent=1 // pred_check
      _
    $region3: #{tpu_custom_call.1} parent=1 // pred_check_branch
      %11 = sbr.rel (0) target = $region5
    $region4: #{tpu_custom_call.1} parent=1 // pred_region
      %13 = vsyncadd [#allocation3], 0
      %s14 = sshll.u32 %s0, 4
      %s15 = int_to_ptr.hbm [resolvable:$true] %s14
      %s16 = sshll.u32 [#allocation2], 4
      %s17 = int_to_ptr.vmem [resolvable:$true] %s16
      %22 = dma.hbm_to_vmem [thread:$0]  %s15, 256, %s17, [#allocation3], 128, 128, 8
    $region5: #{tpu_custom_call.1} parent=1 // pred_fallthru
      _
    // Predicated region
    $region6: #{tpu_custom_call.1} parent=1 // pred_check
      _
    $region7: #{tpu_custom_call.1} parent=1 // pred_check_branch
      %24 = sbr.rel (0) target = $region9
    $region8: #{tpu_custom_call.1} parent=1 // pred_region
      %26 = vsyncadd [#allocation6], 0
      %s27 = sshll.u32 %s1, 4
      %s28 = int_to_ptr.hbm [resolvable:$true] %s27
      %s29 = sshll.u32 [#allocation5], 4
      %s30 = int_to_ptr.vmem [resolvable:$true] %s29
      %35 = dma.hbm_to_vmem [thread:$0]  %s28, 896, %s30, [#allocation6], 128, 128, 8
    $region9: #{tpu_custom_call.1} parent=1 // pred_fallthru
      _
    // Predicated region
    $region10: #{tpu_custom_call.1} parent=1 // pred_check
      _
    $region11: #{tpu_custom_call.1} parent=1 // pred_check_branch
      %37 = sbr.rel (0) target = $region13
    $region12: #{tpu_custom_call.1} parent=1 // pred_region
      %39 = dma.done [#allocation3], 256
    $region13: #{tpu_custom_call.1} parent=1 // pred_fallthru
      _
    // Predicated region
    $region14: #{tpu_custom_call.1} parent=1 // pred_check
      _
    $region15: #{tpu_custom_call.1} parent=1 // pred_check_branch
      %41 = sbr.rel (0) target = $region17
    $region16: #{tpu_custom_call.1} parent=1 // pred_region
      %43 = dma.done [#allocation6], 896
    $region17: #{tpu_custom_call.1} parent=1 // pred_fallthru
      _
    %v44 = vld [vmem:[#allocation2] sm:$0xff]
    %v45 = vld [vmem:[#allocation2 + $0x8] sm:$0xff]
    %v46 = vld [vmem:[#allocation5] sm:$0xff]
    %v47 = vld [vmem:[#allocation5 + $0x8] sm:$0xff]
    %v48 = vld [vmem:[#allocation5 + $0x10] sm:$0xff]
    %v49 = vld [vmem:[#allocation5 + $0x18] sm:$0xff]
    %v50 = vld [vmem:[#allocation5 + $0x20] sm:$0xff]
    %v51 = vld [vmem:[#allocation5 + $0x28] sm:$0xff]
    %v52 = vld [vmem:[#allocation5 + $0x30] sm:$0xff]
    %vm53 = vcmask 457728
    %v55 = vsel %vm53, %v44, 0
    %v58 = vsel %vm53, %v45, 0
    %60 = vmatpush.msra.mxu0 0.0
    %61 = vmatpush.msra.mxu0 0.0
    %62 = vmatpush.msra.mxu0 0.0
    %63 = vmatpush.msra.mxu0 0.0
    %64 = vmatpush.msra.mxu0 0.0
    %65 = vmatpush.msra.mxu0 0.0
    %66 = vmatpush.msra.mxu0 0.0
    %67 = vmatpush.msra.mxu0 0.0
    %68 = vmatpush.msra.mxu0 0.0
    %69 = vmatpush.msra.mxu0 %v52
    %70 = vmatpush.msra.mxu0 %v51
    %71 = vmatpush.msra.mxu0 %v50
    %72 = vmatpush.msra.mxu0 %v49
    %73 = vmatpush.msra.mxu0 %v48
    %74 = vmatpush.msra.mxu0 %v47
    %75 = vmatpush.msra.mxu0 %v46
    %76 = vmatmul.f32.gmra.mxu0 %v55
    %v77 = vpop.f32.mrf.mxu0
    %v78 = vadd.f32 0.0, %v77
    %79 = vmatmul.f32.gmra.mxu0 %v58
    %v80 = vpop.f32.mrf.mxu0
    %v81 = vadd.f32 0.0, %v80
    %82 = vdwg.mxu0
    %83 = vst.msk [vmem:[#allocation7] sm:$0xff] %vm53, %v78
    %84 = vst.msk [vmem:[#allocation7 + $0x8] sm:$0xff] %vm53, %v81
    // Predicated region
    $region18: #{tpu_custom_call.1} parent=1 // pred_check
      _
    $region19: #{tpu_custom_call.1} parent=1 // pred_check_branch
      %86 = sbr.rel (0) target = $region21
    $region20: #{tpu_custom_call.1} parent=1 // pred_region
      %88 = vsyncadd [#allocation4], 0
      %s89 = sshll.u32 [#allocation7], 4
      %s90 = int_to_ptr.vmem [resolvable:$true] %s89
      %s91 = sshll.u32 %s2, 4
      %s92 = int_to_ptr.hbm [resolvable:$true] %s91
      %97 = dma.vmem_to_hbm [thread:$0]  %s90, 256, %s92, [#allocation4], 128, 128, 8
    $region21: #{tpu_custom_call.1} parent=1 // pred_fallthru
      _
    // Predicated region
    $region22: #{tpu_custom_call.1} parent=1 // pred_check
      _
    $region23: #{tpu_custom_call.1} parent=1 // pred_check_branch
      %99 = sbr.rel (0) target = $region25
    $region24: #{tpu_custom_call.1} parent=1 // pred_region
      %101 = dma.done [#allocation4], 256
    $region25: #{tpu_custom_call.1} parent=1 // pred_fallthru
      _
    %102 = vsyncpa [#allocation3], 1
    %103 = vsyncpa [#allocation6], 1
    %104 = vsyncpa [#allocation4], 1

</llo_original>
